<compile_context>
chip_gen: v7x
topology: tpu7x:2x2x1
jax: 0.10.0
libtpu: 0.0.40
codegen_flags: <defaults>
</compile_context>

<pallas_src>
import math
from functools import partial

import jax
import jax.numpy as jnp
from jax.experimental import pallas as pl
from jax.experimental.pallas import tpu as pltpu

_BN_EPS = 1e-5
_INV_SQRT2 = 1.0 / math.sqrt(2.0)
_VMEM_LIMIT = 32 * 1024 * 1024  # safe on v5e/v6e (128 MiB) and v7x (64 MiB)


def _round_up(n, m):
    return ((n + m - 1) // m) * m


# --------------------- pass 1: dense matmul + batch statistics ---------------------
def _dense_stats_kernel(x_ref, w1_ref, gamma_ref, beta_ref, h_ref, stats_ref,
                        *, inv_batch):
    i = pl.program_id(0)

    # Linear(latent, latent) WITHOUT bias: b1 is exactly cancelled by the
    # training-mode BatchNorm mean subtraction, so it is never materialised.
    h = jnp.dot(x_ref[...], w1_ref[...], preferred_element_type=jnp.float32)
    h_ref[...] = h

    # Single-pass moments: accumulate per-channel sum and sum-of-squares.
    # (Padded batch rows are all-zero and contribute nothing; inv_batch uses
    #  the real batch size.)
    @pl.when(i == 0)
    def _():
        stats_ref[...] = jnp.zeros_like(stats_ref)

    stats_ref[0:1, :] += jnp.sum(h, axis=0, keepdims=True)
    stats_ref[1:2, :] += jnp.sum(h * h, axis=0, keepdims=True)

    # Finalize on the last batch tile: fold BN normalize + affine into one
    # per-channel scale/shift so pass 2 does a single FMA per element.
    @pl.when(i == pl.num_programs(0) - 1)
    def _():
        mean = stats_ref[0:1, :] * inv_batch
        var = stats_ref[1:2, :] * inv_batch - mean * mean
        var = jnp.maximum(var, 0.0)  # guard fp cancellation
        scale = gamma_ref[...] * jax.lax.rsqrt(var + _BN_EPS)
        shift = beta_ref[...] - mean * scale
        stats_ref[0:1, :] = scale
        stats_ref[1:2, :] = shift


# --------------------- pass 2: folded BN + GELU + fused output heads ---------------------
def _bn_gelu_heads_kernel(h_ref, stats_ref, wout_ref, bout_ref, out_ref):
    scale = stats_ref[0:1, :]
    shift = stats_ref[1:2, :]
    h = h_ref[...] * scale + shift                     # folded BatchNorm (FMA)
    # Exact erf-based GELU (PyTorch nn.GELU default).
    h = 0.5 * h * (1.0 + jax.lax.erf(h * _INV_SQRT2))
    out = jnp.dot(h.astype(wout_ref.dtype), wout_ref[...],
                  preferred_element_type=jnp.float32)
    out_ref[...] = out + bout_ref[...]


def linear_decoder_forward(x, params, data_size, *, compute_dtype=jnp.bfloat16):
    """x: (B, latent). Returns a list of arrays, one per entry of data_size."""
    w1, b1, gamma, beta, wout, bout = params
    del b1  # exactly cancelled by training-mode BatchNorm mean subtraction

    B, L = x.shape
    total = int(wout.shape[1])
    f32 = jnp.float32

    # ---- padding: lane-dense (multiple-of-128) latent / head dims ----
    LP = _round_up(L, 128)
    TP = _round_up(total, 128)
    if B <= 256:
        tile_b = _round_up(B, 8)
        BP = tile_b
    else:
        tile_b = 256
        BP = _round_up(B, tile_b)
    nb = BP // tile_b

    # Matmul operands in bf16 (MXU fast path on v6e/v7x, fine on v5e),
    # everything elementwise / statistics stays f32.
    xp = jnp.zeros((BP, LP), compute_dtype).at[:B, :L].set(x.astype(compute_dtype))
    w1p = jnp.zeros((LP, LP), compute_dtype).at[:L, :L].set(w1.astype(compute_dtype))
    gammap = jnp.ones((1, LP), f32).at[:, :L].set(gamma.astype(f32))
    betap = jnp.zeros((1, LP), f32).at[:, :L].set(beta.astype(f32))
    woutp = jnp.zeros((LP, TP), compute_dtype).at[:L, :total].set(
        wout.astype(compute_dtype))
    boutp = jnp.zeros((1, TP), f32).at[:, :total].set(bout.astype(f32))

    itemsz = jnp.dtype(compute_dtype).itemsize

    # ---- pass 1: h = x @ W1  and per-channel scale/shift (full-batch stats) ----
    h, stats = pl.pallas_call(
        partial(_dense_stats_kernel, inv_batch=1.0 / B),
        out_shape=(jax.ShapeDtypeStruct((BP, LP), f32),
                   jax.ShapeDtypeStruct((2, LP), f32)),
        grid=(nb,),
        in_specs=[
            pl.BlockSpec((tile_b, LP), lambda i: (i, 0)),   # x tile (streamed)
            pl.BlockSpec((LP, LP), lambda i: (0, 0)),       # W1 (resident)
            pl.BlockSpec((1, LP), lambda i: (0, 0)),        # gamma (resident)
            pl.BlockSpec((1, LP), lambda i: (0, 0)),        # beta  (resident)
        ],
        out_specs=(
            pl.BlockSpec((tile_b, LP), lambda i: (i, 0)),   # h tile (streamed)
            pl.BlockSpec((2, LP), lambda i: (0, 0)),        # stats accumulator
        ),
        compiler_params=pltpu.CompilerParams(
            dimension_semantics=("arbitrary",),             # stats carry across tiles
            vmem_limit_bytes=_VMEM_LIMIT),
        cost_estimate=pl.CostEstimate(
            flops=2 * BP * LP * LP + 4 * BP * LP,
            transcendentals=LP,
            bytes_accessed=(BP * LP * itemsz + LP * LP * itemsz
                            + 2 * LP * 4 + BP * LP * 4 + 2 * LP * 4)),
    )(xp, w1p, gammap, betap)

    # ---- pass 2: folded BN + GELU + all output heads fused in one matmul ----
    out = pl.pallas_call(
        _bn_gelu_heads_kernel,
        out_shape=jax.ShapeDtypeStruct((BP, TP), f32),
        grid=(nb,),
        in_specs=[
            pl.BlockSpec((tile_b, LP), lambda i: (i, 0)),   # h tile (streamed)
            pl.BlockSpec((2, LP), lambda i: (0, 0)),        # scale/shift (resident)
            pl.BlockSpec((LP, TP), lambda i: (0, 0)),       # head weights (resident)
            pl.BlockSpec((1, TP), lambda i: (0, 0)),        # head biases (resident)
        ],
        out_specs=pl.BlockSpec((tile_b, TP), lambda i: (i, 0)),
        compiler_params=pltpu.CompilerParams(
            dimension_semantics=("parallel",),              # shard over v7x's 2 TCs
            vmem_limit_bytes=_VMEM_LIMIT),
        cost_estimate=pl.CostEstimate(
            flops=2 * BP * LP * TP + 8 * BP * LP,
            transcendentals=BP * LP,
            bytes_accessed=(BP * LP * 4 + 2 * LP * 4 + LP * TP * itemsz
                            + TP * 4 + BP * TP * 4)),
    )(h, stats, woutp, boutp)

    # glue: strip padding and split concatenated output back into per-head results
    out = out[:B, :total]
    res = []
    off = 0
    for sz in data_size:
        res.append(out[:, off:off + sz])
        off += sz
    return res


def init_params(key, latent_dim, data_size):
    """Deterministic synthetic parameters matching the module's shapes."""
    keys = jax.random.split(key, 4 + 2 * len(data_size))
    # decoder_dense: Linear(latent, latent), weights stored pre-transposed [in, out]
    w1 = jax.random.normal(keys[0], (latent_dim, latent_dim), jnp.float32) * 0.1
    b1 = jax.random.normal(keys[1], (1, latent_dim), jnp.float32) * 0.1
    # decoder_bn affine params (perturbed away from the PyTorch init so the
    # affine path is exercised non-trivially but deterministically)
    gamma = 1.0 + 0.05 * jax.random.normal(keys[2], (1, latent_dim), jnp.float32)
    beta = 0.05 * jax.random.normal(keys[3], (1, latent_dim), jnp.float32)
    # per-head output Linears, concatenated along the output dimension
    wouts, bouts = [], []
    for i, sz in enumerate(data_size):
        wouts.append(jax.random.normal(keys[4 + 2 * i],
                                       (latent_dim, sz), jnp.float32) * 0.1)
        bouts.append(jax.random.normal(keys[5 + 2 * i],
                                       (1, sz), jnp.float32) * 0.1)
    wout = jnp.concatenate(wouts, axis=1)
    bout = jnp.concatenate(bouts, axis=1)
    return (w1, b1, gamma, beta, wout, bout)


def _reference_forward(x, params, data_size):
    """Pure-JAX f32 reference matching the PyTorch module (with b1 included)."""
    w1, b1, gamma, beta, wout, bout = params
    h = x @ w1 + b1
    mean = h.mean(axis=0, keepdims=True)
    var = ((h - mean) ** 2).mean(axis=0, keepdims=True)   # biased, like torch BN
    h = (h - mean) / jnp.sqrt(var + _BN_EPS) * gamma + beta
    h = 0.5 * h * (1.0 + jax.lax.erf(h * _INV_SQRT2))
    out = h @ wout + bout
    res, off = [], 0
    for sz in data_size:
        res.append(out[:, off:off + sz])
        off += sz
    return res


if __name__ == "__main__":
    # Small shapes consistent with the module's forward:
    #   x: [batch, latent_dim]; two heads with data_size = [48, 16]
    data_type = ["rna", "atac"]
    data_size = [48, 16]
    latent_dim = 32
    batch = 8

    key = jax.random.PRNGKey(0)
    kx, kp = jax.random.split(key)
    x = jax.random.normal(kx, (batch, latent_dim), jnp.float32)
    params = init_params(kp, latent_dim, data_size)

    fwd = jax.jit(partial(linear_decoder_forward, data_size=data_size))
    res = fwd(x, params)
    res = jax.block_until_ready(res)

    ref = _reference_forward(x, params, data_size)

    assert len(res) == len(data_size)
    for r, rr, sz in zip(res, ref, data_size):
        assert r.shape == (batch, sz), r.shape
        assert bool(jnp.all(jnp.isfinite(r)))
        # bf16 MXU operands (f32 accumulation) -> small, tolerated deviation
        assert bool(jnp.allclose(r, rr, atol=5e-2, rtol=5e-2)), (
            float(jnp.max(jnp.abs(r - rr))))
    print("KERNEL_OK")
</pallas_src>

<mosaic_0001>
module attributes {stable_mosaic.version = 11 : i64} {
  func.func @_bn_gelu_heads_kernel(%arg0: i32, %arg1: memref<8x128xf32, #tpu.memory_space<vmem>>, %arg2: memref<2x128xf32, #tpu.memory_space<vmem>>, %arg3: memref<128x128xbf16, #tpu.memory_space<vmem>>, %arg4: memref<1x128xf32, #tpu.memory_space<vmem>>, %arg5: memref<8x128xf32, #tpu.memory_space<vmem>>) attributes {dimension_semantics = [#tpu.dimension_semantics<parallel>], iteration_bounds = array<i64: 1>, scalar_prefetch = 0 : i64, scratch_operands = 0 : i64, tpu.core_type = #tpu.core_type<tc>, window_params = [{transform_indices = @transform_0, window_bounds = array<i64: 8, 128>}, {pipeline_mode = #tpu.pipeline_mode<synchronous>, transform_indices = @transform_1, window_bounds = array<i64: 2, 128>}, {pipeline_mode = #tpu.pipeline_mode<synchronous>, transform_indices = @transform_2, window_bounds = array<i64: 128, 128>}, {pipeline_mode = #tpu.pipeline_mode<synchronous>, transform_indices = @transform_3, window_bounds = array<i64: 1, 128>}, {transform_indices = @transform_4, window_bounds = array<i64: 8, 128>}]} {
    %c0 = arith.constant 0 : index
    %c0_0 = arith.constant 0 : index
    %0 = vector.load %arg2[%c0, %c0_0] : memref<2x128xf32, #tpu.memory_space<vmem>>, vector<1x128xf32>
    %c1 = arith.constant 1 : index
    %c0_1 = arith.constant 0 : index
    %1 = vector.load %arg2[%c1, %c0_1] : memref<2x128xf32, #tpu.memory_space<vmem>>, vector<1x128xf32>
    %c0_2 = arith.constant 0 : index
    %c0_3 = arith.constant 0 : index
    %2 = vector.load %arg1[%c0_2, %c0_3] : memref<8x128xf32, #tpu.memory_space<vmem>>, vector<8x128xf32>
    %3 = vector.broadcast %0 : vector<1x128xf32> to vector<8x128xf32>
    %4 = arith.mulf %2, %3 : vector<8x128xf32>
    %5 = vector.broadcast %1 : vector<1x128xf32> to vector<8x128xf32>
    %6 = arith.addf %4, %5 : vector<8x128xf32>
    %cst = arith.constant 5.000000e-01 : f32
    %7 = vector.broadcast %cst : f32 to vector<8x128xf32>
    %8 = arith.mulf %7, %6 : vector<8x128xf32>
    %cst_4 = arith.constant 0.707106769 : f32
    %9 = vector.broadcast %cst_4 : f32 to vector<8x128xf32>
    %10 = arith.mulf %6, %9 : vector<8x128xf32>
    %11 = math.erf %10 : vector<8x128xf32>
    %cst_5 = arith.constant 1.000000e+00 : f32
    %12 = vector.broadcast %cst_5 : f32 to vector<8x128xf32>
    %13 = arith.addf %12, %11 : vector<8x128xf32>
    %14 = arith.mulf %8, %13 : vector<8x128xf32>
    %15 = arith.truncf %14 : vector<8x128xf32> to vector<8x128xbf16>
    %c0_6 = arith.constant 0 : index
    %c0_7 = arith.constant 0 : index
    %16 = vector.load %arg3[%c0_6, %c0_7] : memref<128x128xbf16, #tpu.memory_space<vmem>>, vector<128x128xbf16>
    %cst_8 = arith.constant dense<0.000000e+00> : vector<8x128xf32>
    %17 = tpu.matmul %15, %16, %cst_8 {dimension_numbers = #tpu.dot_dimension_numbers<[1], [0], [0], [1], [0, 0, 1, 1], [], []>} : vector<8x128xbf16>, vector<128x128xbf16>, vector<8x128xf32> -> vector<8x128xf32>
    %c0_9 = arith.constant 0 : index
    %c0_10 = arith.constant 0 : index
    %18 = vector.load %arg4[%c0_9, %c0_10] : memref<1x128xf32, #tpu.memory_space<vmem>>, vector<1x128xf32>
    %19 = vector.broadcast %18 : vector<1x128xf32> to vector<8x128xf32>
    %20 = arith.addf %17, %19 : vector<8x128xf32>
    %c0_11 = arith.constant 0 : index
    %c0_12 = arith.constant 0 : index
    %21 = vector.load %arg5[%c0_11, %c0_12] : memref<8x128xf32, #tpu.memory_space<vmem>>, vector<8x128xf32>
    tpu.vector_store %arg5[%c0_11, %c0_12], %20 {strides = array<i32>} : memref<8x128xf32, #tpu.memory_space<vmem>>, vector<8x128xf32>,
    return
  }
  func.func @transform_0(%arg0: i32) -> (i32, i32) {
    %c0_i32 = arith.constant 0 : i32
    %c0_i32_0 = arith.constant 0 : i32
    return %arg0, %c0_i32 : i32, i32
  }
  func.func @transform_1(%arg0: i32) -> (i32, i32) {
    %c0_i32 = arith.constant 0 : i32
    %c0_i32_0 = arith.constant 0 : i32
    %c0_i32_1 = arith.constant 0 : i32
    return %c0_i32, %c0_i32_0 : i32, i32
  }
  func.func @transform_2(%arg0: i32) -> (i32, i32) {
    %c0_i32 = arith.constant 0 : i32
    %c0_i32_0 = arith.constant 0 : i32
    %c0_i32_1 = arith.constant 0 : i32
    return %c0_i32, %c0_i32_0 : i32, i32
  }
  func.func @transform_3(%arg0: i32) -> (i32, i32) {
    %c0_i32 = arith.constant 0 : i32
    %c0_i32_0 = arith.constant 0 : i32
    %c0_i32_1 = arith.constant 0 : i32
    return %c0_i32, %c0_i32_0 : i32, i32
  }
  func.func @transform_4(%arg0: i32) -> (i32, i32) {
    %c0_i32 = arith.constant 0 : i32
    %c0_i32_0 = arith.constant 0 : i32
    return %arg0, %c0_i32 : i32, i32
  }
}

module attributes {stable_mosaic.version = 11 : i64} {
  func.func @_dense_stats_kernel(%arg0: i32, %arg1: memref<8x128xbf16, #tpu.memory_space<vmem>>, %arg2: memref<128x128xbf16, #tpu.memory_space<vmem>>, %arg3: memref<1x128xf32, #tpu.memory_space<vmem>>, %arg4: memref<1x128xf32, #tpu.memory_space<vmem>>, %arg5: memref<8x128xf32, #tpu.memory_space<vmem>>, %arg6: memref<2x128xf32, #tpu.memory_space<vmem>>) attributes {dimension_semantics = [#tpu.dimension_semantics<arbitrary>], iteration_bounds = array<i64: 1>, scalar_prefetch = 0 : i64, scratch_operands = 0 : i64, tpu.core_type = #tpu.core_type<tc>, window_params = [{transform_indices = @transform_0, window_bounds = array<i64: 8, 128>}, {pipeline_mode = #tpu.pipeline_mode<synchronous>, transform_indices = @transform_1, window_bounds = array<i64: 128, 128>}, {pipeline_mode = #tpu.pipeline_mode<synchronous>, transform_indices = @transform_2, window_bounds = array<i64: 1, 128>}, {pipeline_mode = #tpu.pipeline_mode<synchronous>, transform_indices = @transform_3, window_bounds = array<i64: 1, 128>}, {transform_indices = @transform_4, window_bounds = array<i64: 8, 128>}, {pipeline_mode = #tpu.pipeline_mode<synchronous>, transform_indices = @transform_5, window_bounds = array<i64: 2, 128>}]} {
    %c0 = arith.constant 0 : index
    %c0_0 = arith.constant 0 : index
    %0 = vector.load %arg1[%c0, %c0_0] : memref<8x128xbf16, #tpu.memory_space<vmem>>, vector<8x128xbf16>
    %c0_1 = arith.constant 0 : index
    %c0_2 = arith.constant 0 : index
    %1 = vector.load %arg2[%c0_1, %c0_2] : memref<128x128xbf16, #tpu.memory_space<vmem>>, vector<128x128xbf16>
    %cst = arith.constant dense<0.000000e+00> : vector<8x128xf32>
    %2 = tpu.matmul %0, %1, %cst {dimension_numbers = #tpu.dot_dimension_numbers<[1], [0], [0], [1], [0, 0, 1, 1], [], []>} : vector<8x128xbf16>, vector<128x128xbf16>, vector<8x128xf32> -> vector<8x128xf32>
    %c0_3 = arith.constant 0 : index
    %c0_4 = arith.constant 0 : index
    %3 = vector.load %arg5[%c0_3, %c0_4] : memref<8x128xf32, #tpu.memory_space<vmem>>, vector<8x128xf32>
    tpu.vector_store %arg5[%c0_3, %c0_4], %2 {strides = array<i32>} : memref<8x128xf32, #tpu.memory_space<vmem>>, vector<8x128xf32>,
    %c0_i32 = arith.constant 0 : i32
    %4 = arith.cmpi eq, %arg0, %c0_i32 : i32
    %5 = arith.extui %4 : i1 to i32
    %c0_i32_5 = arith.constant 0 : i32
    %6 = arith.cmpi ne, %5, %c0_i32_5 : i32
    scf.if %6 {
      %cst_17 = arith.constant 0.000000e+00 : f32
      %21 = vector.broadcast %cst_17 : f32 to vector<2x128xf32>
      %c0_18 = arith.constant 0 : index
      %c0_19 = arith.constant 0 : index
      %22 = vector.load %arg6[%c0_18, %c0_19] : memref<2x128xf32, #tpu.memory_space<vmem>>, vector<2x128xf32>
      tpu.vector_store %arg6[%c0_18, %c0_19], %21 {strides = array<i32>} : memref<2x128xf32, #tpu.memory_space<vmem>>, vector<2x128xf32>,
    } else {
    }
    %c0_6 = arith.constant 0 : index
    %c0_7 = arith.constant 0 : index
    %7 = vector.load %arg6[%c0_6, %c0_7] : memref<2x128xf32, #tpu.memory_space<vmem>>, vector<1x128xf32>
    %cst_8 = arith.constant dense<0.000000e+00> : vector<128xf32>
    %8 = vector.multi_reduction <add>, %2, %cst_8 [0] : vector<8x128xf32> to vector<128xf32>
    %9 = vector.shape_cast %8 : vector<128xf32> to vector<1x128xf32>
    %10 = arith.addf %7, %9 : vector<1x128xf32>
    %c0_9 = arith.constant 0 : index
    %c0_10 = arith.constant 0 : index
    %11 = vector.load %arg6[%c0_9, %c0_10] : memref<2x128xf32, #tpu.memory_space<vmem>>, vector<1x128xf32>
    tpu.vector_store %arg6[%c0_9, %c0_10], %10 {strides = array<i32>} : memref<2x128xf32, #tpu.memory_space<vmem>>, vector<1x128xf32>,
    %c1 = arith.constant 1 : index
    %c0_11 = arith.constant 0 : index
    %12 = vector.load %arg6[%c1, %c0_11] : memref<2x128xf32, #tpu.memory_space<vmem>>, vector<1x128xf32>
    %13 = arith.mulf %2, %2 : vector<8x128xf32>
    %cst_12 = arith.constant dense<0.000000e+00> : vector<128xf32>
    %14 = vector.multi_reduction <add>, %13, %cst_12 [0] : vector<8x128xf32> to vector<128xf32>
    %15 = vector.shape_cast %14 : vector<128xf32> to vector<1x128xf32>
    %16 = arith.addf %12, %15 : vector<1x128xf32>
    %c1_13 = arith.constant 1 : index
    %c0_14 = arith.constant 0 : index
    %17 = vector.load %arg6[%c1_13, %c0_14] : memref<2x128xf32, #tpu.memory_space<vmem>>, vector<1x128xf32>
    tpu.vector_store %arg6[%c1_13, %c0_14], %16 {strides = array<i32>} : memref<2x128xf32, #tpu.memory_space<vmem>>, vector<1x128xf32>,
    %c0_i32_15 = arith.constant 0 : i32
    %18 = arith.cmpi eq, %arg0, %c0_i32_15 : i32
    %19 = arith.extui %18 : i1 to i32
    %c0_i32_16 = arith.constant 0 : i32
    %20 = arith.cmpi ne, %19, %c0_i32_16 : i32
    scf.if %20 {
      %c0_17 = arith.constant 0 : index
      %c0_18 = arith.constant 0 : index
      %21 = vector.load %arg6[%c0_17, %c0_18] : memref<2x128xf32, #tpu.memory_space<vmem>>, vector<1x128xf32>
      %cst_19 = arith.constant 1.250000e-01 : f32
      %22 = vector.broadcast %cst_19 : f32 to vector<1x128xf32>
      %23 = arith.mulf %21, %22 : vector<1x128xf32>
      %c1_20 = arith.constant 1 : index
      %c0_21 = arith.constant 0 : index
      %24 = vector.load %arg6[%c1_20, %c0_21] : memref<2x128xf32, #tpu.memory_space<vmem>>, vector<1x128xf32>
      %cst_22 = arith.constant 1.250000e-01 : f32
      %25 = vector.broadcast %cst_22 : f32 to vector<1x128xf32>
      %26 = arith.mulf %24, %25 : vector<1x128xf32>
      %27 = arith.mulf %23, %23 : vector<1x128xf32>
      %28 = arith.subf %26, %27 : vector<1x128xf32>
      %cst_23 = arith.constant 0.000000e+00 : f32
      %29 = vector.broadcast %cst_23 : f32 to vector<1x128xf32>
      %30 = arith.maximumf %28, %29 : vector<1x128xf32>
      %c0_24 = arith.constant 0 : index
      %c0_25 = arith.constant 0 : index
      %31 = vector.load %arg3[%c0_24, %c0_25] : memref<1x128xf32, #tpu.memory_space<vmem>>, vector<1x128xf32>
      %cst_26 = arith.constant 9.99999974E-6 : f32
      %32 = vector.broadcast %cst_26 : f32 to vector<1x128xf32>
      %33 = arith.addf %30, %32 : vector<1x128xf32>
      %34 = math.rsqrt %33 : vector<1x128xf32>
      %35 = arith.mulf %31, %34 : vector<1x128xf32>
      %c0_27 = arith.constant 0 : index
      %c0_28 = arith.constant 0 : index
      %36 = vector.load %arg4[%c0_27, %c0_28] : memref<1x128xf32, #tpu.memory_space<vmem>>, vector<1x128xf32>
      %37 = arith.mulf %23, %35 : vector<1x128xf32>
      %38 = arith.subf %36, %37 : vector<1x128xf32>
      %c0_29 = arith.constant 0 : index
      %c0_30 = arith.constant 0 : index
      %39 = vector.load %arg6[%c0_29, %c0_30] : memref<2x128xf32, #tpu.memory_space<vmem>>, vector<1x128xf32>
      tpu.vector_store %arg6[%c0_29, %c0_30], %35 {strides = array<i32>} : memref<2x128xf32, #tpu.memory_space<vmem>>, vector<1x128xf32>,
      %c1_31 = arith.constant 1 : index
      %c0_32 = arith.constant 0 : index
      %40 = vector.load %arg6[%c1_31, %c0_32] : memref<2x128xf32, #tpu.memory_space<vmem>>, vector<1x128xf32>
      tpu.vector_store %arg6[%c1_31, %c0_32], %38 {strides = array<i32>} : memref<2x128xf32, #tpu.memory_space<vmem>>, vector<1x128xf32>,
    } else {
    }
    return
  }
  func.func @transform_0(%arg0: i32) -> (i32, i32) {
    %c0_i32 = arith.constant 0 : i32
    %c0_i32_0 = arith.constant 0 : i32
    return %arg0, %c0_i32 : i32, i32
  }
  func.func @transform_1(%arg0: i32) -> (i32, i32) {
    %c0_i32 = arith.constant 0 : i32
    %c0_i32_0 = arith.constant 0 : i32
    %c0_i32_1 = arith.constant 0 : i32
    return %c0_i32, %c0_i32_0 : i32, i32
  }
  func.func @transform_2(%arg0: i32) -> (i32, i32) {
    %c0_i32 = arith.constant 0 : i32
    %c0_i32_0 = arith.constant 0 : i32
    %c0_i32_1 = arith.constant 0 : i32
    return %c0_i32, %c0_i32_0 : i32, i32
  }
  func.func @transform_3(%arg0: i32) -> (i32, i32) {
    %c0_i32 = arith.constant 0 : i32
    %c0_i32_0 = arith.constant 0 : i32
    %c0_i32_1 = arith.constant 0 : i32
    return %c0_i32, %c0_i32_0 : i32, i32
  }
  func.func @transform_4(%arg0: i32) -> (i32, i32) {
    %c0_i32 = arith.constant 0 : i32
    %c0_i32_0 = arith.constant 0 : i32
    return %arg0, %c0_i32 : i32, i32
  }
  func.func @transform_5(%arg0: i32) -> (i32, i32) {
    %c0_i32 = arith.constant 0 : i32
    %c0_i32_0 = arith.constant 0 : i32
    %c0_i32_1 = arith.constant 0 : i32
    return %c0_i32, %c0_i32_0 : i32, i32
  }
}

</mosaic_0001>

<llo_original>
// kernel: linear_decoder_forward.3
$region0: #{linear_decoder_forward.3}
  #allocation0 [shape = 'u32[]', space=smem, size = 0x4, offset = 0x4, fixed_abs, tag = 'smem constant byte address 0x4 - core index']
  #allocation1 [shape = 'u32[144,128]{1,0:T(1,128)}', space=vmem, size = 0x12000, scoped, tag = 'internal scratch']
  %s0 = inlined_call_operand.vmem [shape: f32[8,128], index: 0, kind: input, shape index: {}]
  %s1 = inlined_call_operand.vmem [shape: f32[2,128], index: 1, kind: input, shape index: {}]
  %s2 = inlined_call_operand.vmem [shape: bf16[128,128], index: 2, kind: input, shape index: {}]
  %s3 = inlined_call_operand.vmem [shape: f32[1,128], index: 3, kind: input, shape index: {}]
  %s4 = inlined_call_operand.vmem [shape: f32[8,128], index: 4, kind: output, shape index: {}]
  %s5 = sld [smem:[#allocation0]]
  $region26: #{linear_decoder_forward.3} parent=0
    _
  %s7 = ssub.s32 1, %s5
  %s8 = scalar_select 0, %s7, %s5
  // Predicated region
  $region2: #{linear_decoder_forward.3} parent=0 // pred_check
    _
  $region3: #{linear_decoder_forward.3} parent=0 // pred_check_branch
    %10 = sbr.rel (0) target = $region5
  $region4: #{linear_decoder_forward.3} parent=0 // pred_region
    _
  $region5: #{linear_decoder_forward.3} parent=0 // pred_fallthru
    _
  // Predicated region
  $region6: #{linear_decoder_forward.3} parent=0 // pred_check
    _
  $region7: #{linear_decoder_forward.3} parent=0 // pred_check_branch
    %12 = sbr.rel (0) target = $region9
  $region8: #{linear_decoder_forward.3} parent=0 // pred_region
    _
  $region9: #{linear_decoder_forward.3} parent=0 // pred_fallthru
    _
  // Predicated region
  $region10: #{linear_decoder_forward.3} parent=0 // pred_check
    _
  $region11: #{linear_decoder_forward.3} parent=0 // pred_check_branch
    %14 = sbr.rel (0) target = $region13
  $region12: #{linear_decoder_forward.3} parent=0 // pred_region
    _
  $region13: #{linear_decoder_forward.3} parent=0 // pred_fallthru
    _
  // Predicated region
  $region14: #{linear_decoder_forward.3} parent=0 // pred_check
    _
  $region15: #{linear_decoder_forward.3} parent=0 // pred_check_branch
    %16 = sbr.rel (0) target = $region17
  $region16: #{linear_decoder_forward.3} parent=0 // pred_region
    _
  $region17: #{linear_decoder_forward.3} parent=0 // pred_fallthru
    _
  %v18 = vld [vmem:[%s1] sm:$0x1]
  %v19 = vld [vmem:[%s1 + $0x1] sm:$0x1]
  %v20 = vld [vmem:[%s0] sm:$0xff]
  %v21 = vlaneseq
  %v22 = vshrl.u32 %v21, 7
  %v23 = vsub.s32 0, %v22
  %v24 = vrot.slane %v18, %v23
  %v25 = vmul.f32 %v20, %v24
  %v26 = vlaneseq
  %v27 = vshrl.u32 %v26, 7
  %v28 = vsub.s32 0, %v27
  %v29 = vrot.slane %v19, %v28
  %v30 = vadd.f32 %v25, %v29
  %v31 = vmul.f32 %v30, 0.5
  %v32 = vmul.f32 %v30, 0.70710677
  %v33 = verf.f32.pop %v32
  %v34 = vadd.f32 %v33, 1.0
  %v35 = vmul.f32 %v31, %v34
  %v36 = vpack.c.bf16 %v35, %v35
  %v37 = vld [vmem:[%s2] sm:$0xf]
  %v38 = vld [vmem:[%s2 + $0x4] sm:$0xf]
  %v39 = vld [vmem:[%s2 + $0x8] sm:$0xf]
  %v40 = vld [vmem:[%s2 + $0xc] sm:$0xf]
  %v41 = vld [vmem:[%s2 + $0x10] sm:$0xf]
  %v42 = vld [vmem:[%s2 + $0x14] sm:$0xf]
  %v43 = vld [vmem:[%s2 + $0x18] sm:$0xf]
  %v44 = vld [vmem:[%s2 + $0x1c] sm:$0xf]
  %v45 = vld [vmem:[%s2 + $0x20] sm:$0xf]
  %v46 = vld [vmem:[%s2 + $0x24] sm:$0xf]
  %v47 = vld [vmem:[%s2 + $0x28] sm:$0xf]
  %v48 = vld [vmem:[%s2 + $0x2c] sm:$0xf]
  %v49 = vld [vmem:[%s2 + $0x30] sm:$0xf]
  %v50 = vld [vmem:[%s2 + $0x34] sm:$0xf]
  %v51 = vld [vmem:[%s2 + $0x38] sm:$0xf]
  %v52 = vld [vmem:[%s2 + $0x3c] sm:$0xf]
  %v53 = vld [vmem:[%s3] sm:$0x1]
  %v55 = vlaneseq
  %v56 = vshrl.u32 %v55, 7
  %v57 = vsub.s32 0, %v56
  %v58 = vrot.slane %v53, %v57
  %v76 = vunpack.c.l.b16 %v37
  %v77 = vunpack.c.l.b16 %v38
  %v78 = vunpack.c.l.b16 %v39
  %v79 = vunpack.c.l.b16 %v40
  %v80 = vunpack.c.l.b16 %v41
  %v81 = vunpack.c.l.b16 %v42
  %v82 = vunpack.c.l.b16 %v43
  %v83 = vunpack.c.l.b16 %v44
  %v84 = vunpack.c.l.b16 %v45
  %v85 = vunpack.c.l.b16 %v46
  %v86 = vunpack.c.l.b16 %v47
  %v87 = vunpack.c.l.b16 %v48
  %v88 = vunpack.c.l.b16 %v49
  %v89 = vunpack.c.l.b16 %v50
  %v90 = vunpack.c.l.b16 %v51
  %v91 = vunpack.c.l.b16 %v52
  %v92 = vpack.c.b16 %v77, %v76
  %v93 = vpack.c.b16 %v79, %v78
  %v94 = vpack.c.b16 %v81, %v80
  %v95 = vpack.c.b16 %v83, %v82
  %v96 = vpack.c.b16 %v85, %v84
  %v97 = vpack.c.b16 %v87, %v86
  %v98 = vpack.c.b16 %v89, %v88
  %v99 = vpack.c.b16 %v91, %v90
  %108 = vmatprep.subr.bf16.mxu0 0
  %109 = vmatpush1.bf16.msra.mxu0 %v92
  %110 = vmatprep.subr.bf16.mxu0 0
  %111 = vmatpush1.bf16.msra.mxu0 %v93
  %112 = vmatprep.subr.bf16.mxu0 0
  %113 = vmatpush1.bf16.msra.mxu0 %v94
  %114 = vmatprep.subr.bf16.mxu0 0
  %115 = vmatpush1.bf16.msra.mxu0 %v95
  %116 = vmatprep.subr.bf16.mxu0 0
  %117 = vmatpush1.bf16.msra.mxu0 %v96
  %118 = vmatprep.subr.bf16.mxu0 0
  %119 = vmatpush1.bf16.msra.mxu0 %v97
  %120 = vmatprep.subr.bf16.mxu0 0
  %121 = vmatpush1.bf16.msra.mxu0 %v98
  %122 = vmatprep.subr.bf16.mxu0 0
  %123 = vmatpush1.bf16.msra.mxu0 %v99
  %124 = vmatprep.subr.bf16.mxu0 0
  %125 = vmatpush1.bf16.msra.mxu0 0
  %126 = vmatprep.subr.bf16.mxu0 0
  %127 = vmatpush1.bf16.msra.mxu0 0
  %128 = vmatprep.subr.bf16.mxu0 0
  %129 = vmatpush1.bf16.msra.mxu0 0
  %130 = vmatprep.subr.bf16.mxu0 0
  %131 = vmatpush1.bf16.msra.mxu0 0
  %132 = vmatprep.subr.bf16.mxu0 0
  %133 = vmatpush1.bf16.msra.mxu0 0
  %134 = vmatprep.subr.bf16.mxu0 0
  %135 = vmatpush1.bf16.msra.mxu0 0
  %136 = vmatprep.subr.bf16.mxu0 0
  %137 = vmatpush1.bf16.msra.mxu0 0
  %138 = vmatprep.subr.bf16.mxu0 0
  %139 = vmatpush1.bf16.msra.mxu0 0
  %140 = vmatprep.mubr.bf16.mxu0 0
  %141 = vmatmul.mubr.bf16.gmra.mrb[0].mxu0 %v36
  %v142 = vpop.f32.mrb[0].mxu0
  %v143 = vadd.f32 %v58, %v142
  %v144 = vpop.f32.mrb[0].mxu0
  %v145 = vpop.f32.mrb[0].mxu0
  %v146 = vpop.f32.mrb[0].mxu0
  %147 = vdwg.mxu0
  %148 = vst [vmem:[%s4] sm:$0xff] %v143
  // Predicated region
  $region18: #{linear_decoder_forward.3} parent=0 // pred_check
    _
  $region19: #{linear_decoder_forward.3} parent=0 // pred_check_branch
    %150 = sbr.rel (0) target = $region21
  $region20: #{linear_decoder_forward.3} parent=0 // pred_region
    _
  $region21: #{linear_decoder_forward.3} parent=0 // pred_fallthru
    _
  // Predicated region
  $region22: #{linear_decoder_forward.3} parent=0 // pred_check
    _
  $region23: #{linear_decoder_forward.3} parent=0 // pred_check_branch
    %152 = sbr.rel (0) target = $region25
  $region24: #{linear_decoder_forward.3} parent=0 // pred_region
    _
  $region25: #{linear_decoder_forward.3} parent=0 // pred_fallthru
    _

// kernel: linear_decoder_forward.2
$region0: #{linear_decoder_forward.2}
  #allocation0 [shape = 'u32[]', space=smem, size = 0x4, offset = 0x4, fixed_abs, tag = 'smem constant byte address 0x4 - core index']
  #allocation1 [shape = 'u32[144,128]{1,0:T(1,128)}', space=vmem, size = 0x12000, scoped, tag = 'internal scratch']
  %s0 = inlined_call_operand.vmem [shape: bf16[8,128], index: 0, kind: input, shape index: {}]
  %s1 = inlined_call_operand.vmem [shape: bf16[128,128], index: 1, kind: input, shape index: {}]
  %s2 = inlined_call_operand.vmem [shape: f32[1,128], index: 2, kind: input, shape index: {}]
  %s3 = inlined_call_operand.vmem [shape: f32[1,128], index: 3, kind: input, shape index: {}]
  %s4 = inlined_call_operand.vmem [shape: f32[8,128], index: 4, kind: output, shape index: {0}]
  %s5 = inlined_call_operand.vmem [shape: f32[2,128], index: 5, kind: output, shape index: {1}]
  %6 = xla_tuple %s4, %s5
  %s7 = sld [smem:[#allocation0]]
  $region42: #{linear_decoder_forward.2} parent=0
    _
  %s9 = ssub.s32 1, %s7
  %s10 = scalar_select 0, %s9, %s7
  // Predicated region
  $region2: #{linear_decoder_forward.2} parent=0 // pred_check
    _
  $region3: #{linear_decoder_forward.2} parent=0 // pred_check_branch
    %12 = sbr.rel (0) target = $region5
  $region4: #{linear_decoder_forward.2} parent=0 // pred_region
    _
  $region5: #{linear_decoder_forward.2} parent=0 // pred_fallthru
    _
  // Predicated region
  $region6: #{linear_decoder_forward.2} parent=0 // pred_check
    _
  $region7: #{linear_decoder_forward.2} parent=0 // pred_check_branch
    %14 = sbr.rel (0) target = $region9
  $region8: #{linear_decoder_forward.2} parent=0 // pred_region
    _
  $region9: #{linear_decoder_forward.2} parent=0 // pred_fallthru
    _
  // Predicated region
  $region10: #{linear_decoder_forward.2} parent=0 // pred_check
    _
  $region11: #{linear_decoder_forward.2} parent=0 // pred_check_branch
    %16 = sbr.rel (0) target = $region13
  $region12: #{linear_decoder_forward.2} parent=0 // pred_region
    _
  $region13: #{linear_decoder_forward.2} parent=0 // pred_fallthru
    _
  // Predicated region
  $region14: #{linear_decoder_forward.2} parent=0 // pred_check
    _
  $region15: #{linear_decoder_forward.2} parent=0 // pred_check_branch
    %18 = sbr.rel (0) target = $region17
  $region16: #{linear_decoder_forward.2} parent=0 // pred_region
    _
  $region17: #{linear_decoder_forward.2} parent=0 // pred_fallthru
    _
  %v20 = vld [vmem:[%s0] sm:$0xf]
  %v21 = vld [vmem:[%s1] sm:$0xf]
  %v22 = vld [vmem:[%s1 + $0x4] sm:$0xf]
  %v23 = vld [vmem:[%s1 + $0x8] sm:$0xf]
  %v24 = vld [vmem:[%s1 + $0xc] sm:$0xf]
  %v25 = vld [vmem:[%s1 + $0x10] sm:$0xf]
  %v26 = vld [vmem:[%s1 + $0x14] sm:$0xf]
  %v27 = vld [vmem:[%s1 + $0x18] sm:$0xf]
  %v28 = vld [vmem:[%s1 + $0x1c] sm:$0xf]
  %v29 = vld [vmem:[%s1 + $0x20] sm:$0xf]
  %v30 = vld [vmem:[%s1 + $0x24] sm:$0xf]
  %v31 = vld [vmem:[%s1 + $0x28] sm:$0xf]
  %v32 = vld [vmem:[%s1 + $0x2c] sm:$0xf]
  %v33 = vld [vmem:[%s1 + $0x30] sm:$0xf]
  %v34 = vld [vmem:[%s1 + $0x34] sm:$0xf]
  %v35 = vld [vmem:[%s1 + $0x38] sm:$0xf]
  %v36 = vld [vmem:[%s1 + $0x3c] sm:$0xf]
  %v53 = vunpack.c.l.b16 %v21
  %v54 = vunpack.c.l.b16 %v22
  %v55 = vunpack.c.l.b16 %v23
  %v56 = vunpack.c.l.b16 %v24
  %v57 = vunpack.c.l.b16 %v25
  %v58 = vunpack.c.l.b16 %v26
  %v59 = vunpack.c.l.b16 %v27
  %v60 = vunpack.c.l.b16 %v28
  %v61 = vunpack.c.l.b16 %v29
  %v62 = vunpack.c.l.b16 %v30
  %v63 = vunpack.c.l.b16 %v31
  %v64 = vunpack.c.l.b16 %v32
  %v65 = vunpack.c.l.b16 %v33
  %v66 = vunpack.c.l.b16 %v34
  %v67 = vunpack.c.l.b16 %v35
  %v68 = vunpack.c.l.b16 %v36
  %v69 = vpack.c.b16 %v54, %v53
  %v70 = vpack.c.b16 %v56, %v55
  %v71 = vpack.c.b16 %v58, %v57
  %v72 = vpack.c.b16 %v60, %v59
  %v73 = vpack.c.b16 %v62, %v61
  %v74 = vpack.c.b16 %v64, %v63
  %v75 = vpack.c.b16 %v66, %v65
  %v76 = vpack.c.b16 %v68, %v67
  %85 = vmatprep.subr.bf16.mxu0 0
  %86 = vmatpush1.bf16.msra.mxu0 %v69
  %87 = vmatprep.subr.bf16.mxu0 0
  %88 = vmatpush1.bf16.msra.mxu0 %v70
  %89 = vmatprep.subr.bf16.mxu0 0
  %90 = vmatpush1.bf16.msra.mxu0 %v71
  %91 = vmatprep.subr.bf16.mxu0 0
  %92 = vmatpush1.bf16.msra.mxu0 %v72
  %93 = vmatprep.subr.bf16.mxu0 0
  %94 = vmatpush1.bf16.msra.mxu0 %v73
  %95 = vmatprep.subr.bf16.mxu0 0
  %96 = vmatpush1.bf16.msra.mxu0 %v74
  %97 = vmatprep.subr.bf16.mxu0 0
  %98 = vmatpush1.bf16.msra.mxu0 %v75
  %99 = vmatprep.subr.bf16.mxu0 0
  %100 = vmatpush1.bf16.msra.mxu0 %v76
  %101 = vmatprep.subr.bf16.mxu0 0
  %102 = vmatpush1.bf16.msra.mxu0 0
  %103 = vmatprep.subr.bf16.mxu0 0
  %104 = vmatpush1.bf16.msra.mxu0 0
  %105 = vmatprep.subr.bf16.mxu0 0
  %106 = vmatpush1.bf16.msra.mxu0 0
  %107 = vmatprep.subr.bf16.mxu0 0
  %108 = vmatpush1.bf16.msra.mxu0 0
  %109 = vmatprep.subr.bf16.mxu0 0
  %110 = vmatpush1.bf16.msra.mxu0 0
  %111 = vmatprep.subr.bf16.mxu0 0
  %112 = vmatpush1.bf16.msra.mxu0 0
  %113 = vmatprep.subr.bf16.mxu0 0
  %114 = vmatpush1.bf16.msra.mxu0 0
  %115 = vmatprep.subr.bf16.mxu0 0
  %116 = vmatpush1.bf16.msra.mxu0 0
  %117 = vmatprep.mubr.bf16.mxu0 0
  %118 = vmatmul.mubr.bf16.gmra.mrb[0].mxu0 %v20
  %v119 = vpop.f32.mrb[0].mxu0
  %v120 = vadd.f32 0.0, %v119
  %v121 = vpop.f32.mrb[0].mxu0
  %v122 = vpop.f32.mrb[0].mxu0
  %v123 = vpop.f32.mrb[0].mxu0
  %124 = vdwg.mxu0
  %125 = vst [vmem:[%s4] sm:$0xff] %v120
  %p126 = scmp.eq.s32.totalorder 0, 0
  // Predicated region
  $region18: #{linear_decoder_forward.2} parent=0 // pred_check
    %p127 = pneg %p126
  $region19: #{linear_decoder_forward.2} parent=0 // pred_check_branch
    %129 = sbr.rel (%p127) target = $region21
  $region20: #{linear_decoder_forward.2} parent=0 // pred_region
    %130 = vst [vmem:[%s5] sm:$0x3] 0.0
  $region21: #{linear_decoder_forward.2} parent=0 // pred_fallthru
    _
  %v131 = vld [vmem:[%s5] sm:$0x1]
  %v132 = vrot.slane %v120, 4
  %v133 = vadd.f32 %v120, %v132
  %v134 = vrot.slane %v133, 2
  %v135 = vadd.f32 %v133, %v134
  %v136 = vrot.slane %v135, 1
  %v137 = vadd.f32 %v135, %v136
  %v138 = vadd.f32 %v131, %v137
  %139 = vst [vmem:[%s5] sm:$0x1] %v138
  %v140 = vld [vmem:[%s5 + $0x1] sm:$0x1]
  %v141 = vmul.f32 %v120, %v120
  %v142 = vrot.slane %v141, 4
  %v143 = vadd.f32 %v141, %v142
  %v144 = vrot.slane %v143, 2
  %v145 = vadd.f32 %v143, %v144
  %v146 = vrot.slane %v145, 1
  %v147 = vadd.f32 %v145, %v146
  %v148 = vadd.f32 %v140, %v147
  %149 = vst [vmem:[%s5 + $0x1] sm:$0x1] %v148
  // Predicated region
  $region22: #{linear_decoder_forward.2} parent=0 // pred_check
    %p150 = pneg %p126
  $region23: #{linear_decoder_forward.2} parent=0 // pred_check_branch
    %152 = sbr.rel (%p150) target = $region25
  $region24: #{linear_decoder_forward.2} parent=0 // pred_region
    %v153 = vld [vmem:[%s5] sm:$0x1]
    %v154 = vmul.f32 %v153, 0.125
    %v155 = vld [vmem:[%s5 + $0x1] sm:$0x1]
    %v156 = vmul.f32 %v155, 0.125
    %v157 = vmul.f32 %v154, %v154
    %v158 = vsub.f32 %v156, %v157
    %v159 = vmax.f32 %v158, 0.0
    %v160 = vld [vmem:[%s2] sm:$0x1]
    %v161 = vadd.f32 %v159, 1e-05
    %v162 = vrsqrt.pop %v161
    %v163 = vmul.f32 %v160, %v162
    %v164 = vld [vmem:[%s3] sm:$0x1]
    %v165 = vmul.f32 %v154, %v163
    %v166 = vsub.f32 %v164, %v165
    %167 = vst [vmem:[%s5] sm:$0x1] %v163
    %168 = vst [vmem:[%s5 + $0x1] sm:$0x1] %v166
  $region25: #{linear_decoder_forward.2} parent=0 // pred_fallthru
    _
  // Predicated region
  $region26: #{linear_decoder_forward.2} parent=0 // pred_check
    _
  $region27: #{linear_decoder_forward.2} parent=0 // pred_check_branch
    %170 = sbr.rel (0) target = $region29
  $region28: #{linear_decoder_forward.2} parent=0 // pred_region
    _
  $region29: #{linear_decoder_forward.2} parent=0 // pred_fallthru
    _
  // Predicated region
  $region30: #{linear_decoder_forward.2} parent=0 // pred_check
    _
  $region31: #{linear_decoder_forward.2} parent=0 // pred_check_branch
    %172 = sbr.rel (0) target = $region33
  $region32: #{linear_decoder_forward.2} parent=0 // pred_region
    _
  $region33: #{linear_decoder_forward.2} parent=0 // pred_fallthru
    _
  // Predicated region
  $region34: #{linear_decoder_forward.2} parent=0 // pred_check
    _
  $region35: #{linear_decoder_forward.2} parent=0 // pred_check_branch
    %174 = sbr.rel (0) target = $region37
  $region36: #{linear_decoder_forward.2} parent=0 // pred_region
    _
  $region37: #{linear_decoder_forward.2} parent=0 // pred_fallthru
    _
  // Predicated region
  $region38: #{linear_decoder_forward.2} parent=0 // pred_check
    _
  $region39: #{linear_decoder_forward.2} parent=0 // pred_check_branch
    %176 = sbr.rel (0) target = $region41
  $region40: #{linear_decoder_forward.2} parent=0 // pred_region
    _
  $region41: #{linear_decoder_forward.2} parent=0 // pred_fallthru
    _

</llo_original>
